<compile_context>
chip_gen: v6e
topology: v6e:2x2x1
jax: 0.10.0
libtpu: 0.0.40
codegen_flags: <defaults>
</compile_context>

<pallas_src>
import jax
import jax.numpy as jnp
from jax import lax
from jax.experimental import pallas as pl
from jax.experimental.pallas import tpu as pltpu


def skipgram_kernel(ids_ref, emb_hbm, w_ref, b_ref, out_ref, emb_vmem, sem):
    # ids_ref : (Bp,)   int32  SMEM (scalar prefetch)  token ids
    # emb_hbm : (V, D)  f32    HBM  (memory_space=ANY) embedding table
    # w_ref   : (D, Vp) f32    VMEM                    linear weight (transposed + padded)
    # b_ref   : (1, Vp) f32    VMEM                    bias, padded cols = -1e30
    # out_ref : (TB,Vp) f32    VMEM                    softmax probabilities
    # emb_vmem: (TB, D) f32    VMEM scratch            gathered embedding rows
    # sem     : DMA semaphore
    tb = emb_vmem.shape[0]
    num_rows = emb_hbm.shape[0]
    base = pl.program_id(0) * tb
    unroll = tb <= 32  # fully unroll the tiny per-row DMA loops for small tiles

    def _row_copy(dst_row, src_row):
        return pltpu.make_async_copy(
            emb_hbm.at[pl.ds(src_row, 1), :],
            emb_vmem.at[pl.ds(dst_row, 1), :],
            sem)

    # In-kernel embedding gather: DMA only the rows this batch tile needs (512 B each).
    def _start(r, carry):
        idx = ids_ref[base + r]
        # TODO(synk): nn.Embedding raises on out-of-range ids; here they are clamped.
        idx = jnp.minimum(jnp.maximum(idx, 0), num_rows - 1)
        _row_copy(r, idx).start()
        return carry

    lax.fori_loop(0, tb, _start, 0, unroll=unroll)

    def _wait(r, carry):
        _row_copy(0, 0).wait()  # descriptor only needs matching byte count
        return carry

    lax.fori_loop(0, tb, _wait, 0, unroll=unroll)

    # Linear layer on the MXU (f32 accumulate) + bias.
    logits = jnp.dot(emb_vmem[...], w_ref[...],
                     preferred_element_type=jnp.float32) + b_ref[...]   # (TB, Vp)

    # Softmax over the (padded) vocab axis; padded columns hold -1e30 -> exp == 0,
    # so normalization matches the unpadded PyTorch softmax exactly.
    m = jnp.max(logits, axis=-1, keepdims=True)
    p = jnp.exp(logits - m)
    s = jnp.sum(p, axis=-1, keepdims=True)
    out_ref[...] = p / s


def prepare_params(lin_w, lin_b):
    """One-time weight transform, hoisted out of the forward hot path.

    lin_w: (V, D) PyTorch nn.Linear layout; lin_b: (V,).
    Returns w_t (D, Vp) f32 and b2d (1, Vp) f32 with the vocab axis padded to a
    multiple of 128 (lane-dense); padded bias columns are -1e30.
    """
    V, D = lin_w.shape
    Vp = ((V + 127) // 128) * 128
    w_t = jnp.pad(lin_w.T.astype(jnp.float32), ((0, 0), (0, Vp - V)))       # (D, Vp)
    b2d = jnp.pad(lin_b.reshape(1, V).astype(jnp.float32),
                  ((0, 0), (0, Vp - V)), constant_values=-1e30)              # (1, Vp)
    return w_t, b2d


@jax.jit
def block_skipgram_forward(x, emb_table, w_t, b2d):
    """x: (B,) int ids; emb_table: (V, D) f32; w_t/b2d: pre-transformed linear params."""
    B = x.shape[0]
    V, D = emb_table.shape
    Vp = w_t.shape[1]

    # Batch padding: sublane multiple of 8; tile cap 256 (fills the 256-wide MXU on
    # v6e/v7x; at this problem size VMEM use is ~1.5 MiB on any generation).
    Bp = ((B + 7) // 8) * 8
    if Bp <= 256:
        TB = Bp
    else:
        TB = 256
        Bp = ((Bp + 255) // 256) * 256
    nb = Bp // TB

    ids = x.astype(jnp.int32)
    if Bp != B:
        ids = jnp.pad(ids, (0, Bp - B))   # padded rows gather row 0; sliced off below

    grid_spec = pltpu.PrefetchScalarGridSpec(
        num_scalar_prefetch=1,                      # ids -> SMEM, visible to index_maps
        grid=(nb,),
        in_specs=[
            pl.BlockSpec(memory_space=pl.ANY),          # embedding table stays in HBM
            pl.BlockSpec((D, Vp), lambda i, ids: (0, 0)),   # weights VMEM-resident
            pl.BlockSpec((1, Vp), lambda i, ids: (0, 0)),   # bias VMEM-resident
        ],
        out_specs=pl.BlockSpec((TB, Vp), lambda i, ids: (i, 0)),
        scratch_shapes=[
            pltpu.VMEM((TB, D), jnp.float32),   # gathered embedding rows
            pltpu.SemaphoreType.DMA,            # gather-DMA completion
        ],
    )

    out_padded = pl.pallas_call(
        skipgram_kernel,
        out_shape=jax.ShapeDtypeStruct((Bp, Vp), jnp.float32),
        grid_spec=grid_spec,
        compiler_params=pltpu.CompilerParams(
            dimension_semantics=("parallel",)),     # batch tiles are independent
        cost_estimate=pl.CostEstimate(
            flops=2 * Bp * D * Vp,
            transcendentals=Bp * Vp,
            bytes_accessed=4 * (Bp * D + D * Vp + Vp + Bp * Vp) + 4 * Bp,
        ),
    )(ids, emb_table, w_t, b2d)

    return out_padded[:B, :V]


def reference_forward(x, emb_table, lin_w, lin_b):
    e = emb_table[x]                    # (B, D)
    logits = e @ lin_w.T + lin_b        # (B, V)
    return jax.nn.softmax(logits, axis=1)


if __name__ == "__main__":
    NUM_EMBEDDING = 1162
    EMBEDDING_DIM = 128
    BATCH = 8

    key = jax.random.PRNGKey(0)
    k_emb, k_w, k_b, k_x = jax.random.split(key, 4)

    # nn.Embedding weight re-initialized uniform(-1, 1) in __init__
    emb_table = jax.random.uniform(
        k_emb, (NUM_EMBEDDING, EMBEDDING_DIM), jnp.float32, minval=-1.0, maxval=1.0)

    # nn.Linear default init: U(-1/sqrt(in_features), 1/sqrt(in_features))
    bound = 1.0 / (EMBEDDING_DIM ** 0.5)
    lin_w = jax.random.uniform(
        k_w, (NUM_EMBEDDING, EMBEDDING_DIM), jnp.float32, minval=-bound, maxval=bound)
    lin_b = jax.random.uniform(
        k_b, (NUM_EMBEDDING,), jnp.float32, minval=-bound, maxval=bound)

    # Token-id inputs
    x = jax.random.randint(k_x, (BATCH,), 0, NUM_EMBEDDING, dtype=jnp.int32)

    # One-time parameter transform (NOT in the per-call hot path).
    w_t, b2d = prepare_params(lin_w, lin_b)
    w_t, b2d = jax.block_until_ready((w_t, b2d))

    out = block_skipgram_forward(x, emb_table, w_t, b2d)
    out = jax.block_until_ready(out)

    ref = reference_forward(x, emb_table, lin_w, lin_b)
    assert out.shape == (BATCH, NUM_EMBEDDING)
    # f32 weights + exact softmax divide: tight tolerance (small slack for MXU f32
    # matmul pass differences between Mosaic and XLA).
    assert jnp.allclose(out, ref, atol=1e-5, rtol=2e-2), "mismatch vs reference"
    # Rows sum to 1 to f32 precision despite the padded columns.
    assert jnp.allclose(out.sum(axis=1), 1.0, atol=1e-5), "softmax rows do not sum to 1"

    print("KERNEL_OK")
</pallas_src>

<mosaic_0001>
module attributes {stable_mosaic.version = 11 : i64} {
  func.func @skipgram_kernel(%arg0: i32, %arg1: memref<8xi32, #tpu.memory_space<smem>>, %arg2: memref<1162x128xf32, #tpu.memory_space<any>>, %arg3: memref<128x1280xf32, #tpu.memory_space<vmem>>, %arg4: memref<1x1280xf32, #tpu.memory_space<vmem>>, %arg5: memref<8x1280xf32, #tpu.memory_space<vmem>>, %arg6: memref<8x128xf32, #tpu.memory_space<vmem>>, %arg7: memref<!tpu.dma_semaphore, #tpu.memory_space<semaphore_mem>>) attributes {dimension_semantics = [#tpu.dimension_semantics<parallel>], iteration_bounds = array<i64: 1>, scalar_prefetch = 1 : i64, scratch_operands = 2 : i64, tpu.core_type = #tpu.core_type<tc>, window_params = [{}, {pipeline_mode = #tpu.pipeline_mode<synchronous>, transform_indices = @transform_1, window_bounds = array<i64: 128, 1280>}, {pipeline_mode = #tpu.pipeline_mode<synchronous>, transform_indices = @transform_2, window_bounds = array<i64: 1, 1280>}, {transform_indices = @transform_3, window_bounds = array<i64: 8, 1280>}]} {
    %c8_i32 = arith.constant 8 : i32
    %0 = arith.muli %arg0, %c8_i32 : i32
    %c0_i32 = arith.constant 0 : i32
    %1 = arith.addi %0, %c0_i32 : i32
    %2 = arith.index_cast %1 : i32 to index
    %3 = memref.load %arg1[%2] : memref<8xi32, #tpu.memory_space<smem>>
    %c0_i32_0 = arith.constant 0 : i32
    %4 = arith.maxsi %3, %c0_i32_0 : i32
    %c1161_i32 = arith.constant 1161 : i32
    %5 = arith.minsi %4, %c1161_i32 : i32
    %c0_i32_1 = arith.constant 0 : i32
    %6 = tpu.memref_slice %arg2[%5, %c0_i32_1] : memref<1162x128xf32, #tpu.memory_space<any>> -> memref<1x128xf32, #tpu.memory_space<any>>
    %c0_i32_2 = arith.constant 0 : i32
    %7 = tpu.memref_slice %arg6[%c0_i32, %c0_i32_2] : memref<8x128xf32, #tpu.memory_space<vmem>> -> memref<1x128xf32, #tpu.memory_space<vmem>>
    tpu.enqueue_dma source(%6 : memref<1x128xf32, #tpu.memory_space<any>>) target(%7 : memref<1x128xf32, #tpu.memory_space<vmem>>) target_semaphore(%arg7 : memref<!tpu.dma_semaphore, #tpu.memory_space<semaphore_mem>>)
    %c1_i32 = arith.constant 1 : i32
    %8 = arith.addi %0, %c1_i32 : i32
    %9 = arith.index_cast %8 : i32 to index
    %10 = memref.load %arg1[%9] : memref<8xi32, #tpu.memory_space<smem>>
    %c0_i32_3 = arith.constant 0 : i32
    %11 = arith.maxsi %10, %c0_i32_3 : i32
    %c1161_i32_4 = arith.constant 1161 : i32
    %12 = arith.minsi %11, %c1161_i32_4 : i32
    %c0_i32_5 = arith.constant 0 : i32
    %13 = tpu.memref_slice %arg2[%12, %c0_i32_5] : memref<1162x128xf32, #tpu.memory_space<any>> -> memref<1x128xf32, #tpu.memory_space<any>>
    %c0_i32_6 = arith.constant 0 : i32
    %14 = tpu.memref_slice %arg6[%c1_i32, %c0_i32_6] : memref<8x128xf32, #tpu.memory_space<vmem>> -> memref<1x128xf32, #tpu.memory_space<vmem>>
    tpu.enqueue_dma source(%13 : memref<1x128xf32, #tpu.memory_space<any>>) target(%14 : memref<1x128xf32, #tpu.memory_space<vmem>>) target_semaphore(%arg7 : memref<!tpu.dma_semaphore, #tpu.memory_space<semaphore_mem>>)
    %c2_i32 = arith.constant 2 : i32
    %15 = arith.addi %0, %c2_i32 : i32
    %16 = arith.index_cast %15 : i32 to index
    %17 = memref.load %arg1[%16] : memref<8xi32, #tpu.memory_space<smem>>
    %c0_i32_7 = arith.constant 0 : i32
    %18 = arith.maxsi %17, %c0_i32_7 : i32
    %c1161_i32_8 = arith.constant 1161 : i32
    %19 = arith.minsi %18, %c1161_i32_8 : i32
    %c0_i32_9 = arith.constant 0 : i32
    %20 = tpu.memref_slice %arg2[%19, %c0_i32_9] : memref<1162x128xf32, #tpu.memory_space<any>> -> memref<1x128xf32, #tpu.memory_space<any>>
    %c0_i32_10 = arith.constant 0 : i32
    %21 = tpu.memref_slice %arg6[%c2_i32, %c0_i32_10] : memref<8x128xf32, #tpu.memory_space<vmem>> -> memref<1x128xf32, #tpu.memory_space<vmem>>
    tpu.enqueue_dma source(%20 : memref<1x128xf32, #tpu.memory_space<any>>) target(%21 : memref<1x128xf32, #tpu.memory_space<vmem>>) target_semaphore(%arg7 : memref<!tpu.dma_semaphore, #tpu.memory_space<semaphore_mem>>)
    %c3_i32 = arith.constant 3 : i32
    %22 = arith.addi %0, %c3_i32 : i32
    %23 = arith.index_cast %22 : i32 to index
    %24 = memref.load %arg1[%23] : memref<8xi32, #tpu.memory_space<smem>>
    %c0_i32_11 = arith.constant 0 : i32
    %25 = arith.maxsi %24, %c0_i32_11 : i32
    %c1161_i32_12 = arith.constant 1161 : i32
    %26 = arith.minsi %25, %c1161_i32_12 : i32
    %c0_i32_13 = arith.constant 0 : i32
    %27 = tpu.memref_slice %arg2[%26, %c0_i32_13] : memref<1162x128xf32, #tpu.memory_space<any>> -> memref<1x128xf32, #tpu.memory_space<any>>
    %c0_i32_14 = arith.constant 0 : i32
    %28 = tpu.memref_slice %arg6[%c3_i32, %c0_i32_14] : memref<8x128xf32, #tpu.memory_space<vmem>> -> memref<1x128xf32, #tpu.memory_space<vmem>>
    tpu.enqueue_dma source(%27 : memref<1x128xf32, #tpu.memory_space<any>>) target(%28 : memref<1x128xf32, #tpu.memory_space<vmem>>) target_semaphore(%arg7 : memref<!tpu.dma_semaphore, #tpu.memory_space<semaphore_mem>>)
    %c4_i32 = arith.constant 4 : i32
    %29 = arith.addi %0, %c4_i32 : i32
    %30 = arith.index_cast %29 : i32 to index
    %31 = memref.load %arg1[%30] : memref<8xi32, #tpu.memory_space<smem>>
    %c0_i32_15 = arith.constant 0 : i32
    %32 = arith.maxsi %31, %c0_i32_15 : i32
    %c1161_i32_16 = arith.constant 1161 : i32
    %33 = arith.minsi %32, %c1161_i32_16 : i32
    %c0_i32_17 = arith.constant 0 : i32
    %34 = tpu.memref_slice %arg2[%33, %c0_i32_17] : memref<1162x128xf32, #tpu.memory_space<any>> -> memref<1x128xf32, #tpu.memory_space<any>>
    %c0_i32_18 = arith.constant 0 : i32
    %35 = tpu.memref_slice %arg6[%c4_i32, %c0_i32_18] : memref<8x128xf32, #tpu.memory_space<vmem>> -> memref<1x128xf32, #tpu.memory_space<vmem>>
    tpu.enqueue_dma source(%34 : memref<1x128xf32, #tpu.memory_space<any>>) target(%35 : memref<1x128xf32, #tpu.memory_space<vmem>>) target_semaphore(%arg7 : memref<!tpu.dma_semaphore, #tpu.memory_space<semaphore_mem>>)
    %c5_i32 = arith.constant 5 : i32
    %36 = arith.addi %0, %c5_i32 : i32
    %37 = arith.index_cast %36 : i32 to index
    %38 = memref.load %arg1[%37] : memref<8xi32, #tpu.memory_space<smem>>
    %c0_i32_19 = arith.constant 0 : i32
    %39 = arith.maxsi %38, %c0_i32_19 : i32
    %c1161_i32_20 = arith.constant 1161 : i32
    %40 = arith.minsi %39, %c1161_i32_20 : i32
    %c0_i32_21 = arith.constant 0 : i32
    %41 = tpu.memref_slice %arg2[%40, %c0_i32_21] : memref<1162x128xf32, #tpu.memory_space<any>> -> memref<1x128xf32, #tpu.memory_space<any>>
    %c0_i32_22 = arith.constant 0 : i32
    %42 = tpu.memref_slice %arg6[%c5_i32, %c0_i32_22] : memref<8x128xf32, #tpu.memory_space<vmem>> -> memref<1x128xf32, #tpu.memory_space<vmem>>
    tpu.enqueue_dma source(%41 : memref<1x128xf32, #tpu.memory_space<any>>) target(%42 : memref<1x128xf32, #tpu.memory_space<vmem>>) target_semaphore(%arg7 : memref<!tpu.dma_semaphore, #tpu.memory_space<semaphore_mem>>)
    %c6_i32 = arith.constant 6 : i32
    %43 = arith.addi %0, %c6_i32 : i32
    %44 = arith.index_cast %43 : i32 to index
    %45 = memref.load %arg1[%44] : memref<8xi32, #tpu.memory_space<smem>>
    %c0_i32_23 = arith.constant 0 : i32
    %46 = arith.maxsi %45, %c0_i32_23 : i32
    %c1161_i32_24 = arith.constant 1161 : i32
    %47 = arith.minsi %46, %c1161_i32_24 : i32
    %c0_i32_25 = arith.constant 0 : i32
    %48 = tpu.memref_slice %arg2[%47, %c0_i32_25] : memref<1162x128xf32, #tpu.memory_space<any>> -> memref<1x128xf32, #tpu.memory_space<any>>
    %c0_i32_26 = arith.constant 0 : i32
    %49 = tpu.memref_slice %arg6[%c6_i32, %c0_i32_26] : memref<8x128xf32, #tpu.memory_space<vmem>> -> memref<1x128xf32, #tpu.memory_space<vmem>>
    tpu.enqueue_dma source(%48 : memref<1x128xf32, #tpu.memory_space<any>>) target(%49 : memref<1x128xf32, #tpu.memory_space<vmem>>) target_semaphore(%arg7 : memref<!tpu.dma_semaphore, #tpu.memory_space<semaphore_mem>>)
    %c7_i32 = arith.constant 7 : i32
    %50 = arith.addi %0, %c7_i32 : i32
    %51 = arith.index_cast %50 : i32 to index
    %52 = memref.load %arg1[%51] : memref<8xi32, #tpu.memory_space<smem>>
    %c0_i32_27 = arith.constant 0 : i32
    %53 = arith.maxsi %52, %c0_i32_27 : i32
    %c1161_i32_28 = arith.constant 1161 : i32
    %54 = arith.minsi %53, %c1161_i32_28 : i32
    %c0_i32_29 = arith.constant 0 : i32
    %55 = tpu.memref_slice %arg2[%54, %c0_i32_29] : memref<1162x128xf32, #tpu.memory_space<any>> -> memref<1x128xf32, #tpu.memory_space<any>>
    %c0_i32_30 = arith.constant 0 : i32
    %56 = tpu.memref_slice %arg6[%c7_i32, %c0_i32_30] : memref<8x128xf32, #tpu.memory_space<vmem>> -> memref<1x128xf32, #tpu.memory_space<vmem>>
    tpu.enqueue_dma source(%55 : memref<1x128xf32, #tpu.memory_space<any>>) target(%56 : memref<1x128xf32, #tpu.memory_space<vmem>>) target_semaphore(%arg7 : memref<!tpu.dma_semaphore, #tpu.memory_space<semaphore_mem>>)
    %c8_i32_31 = arith.constant 8 : i32
    %c0_i32_32 = arith.constant 0 : i32
    %c0_i32_33 = arith.constant 0 : i32
    %c0_i32_34 = arith.constant 0 : i32
    %57 = tpu.memref_slice %arg2[%c0_i32_33, %c0_i32_34] : memref<1162x128xf32, #tpu.memory_space<any>> -> memref<1x128xf32, #tpu.memory_space<any>>
    %c0_i32_35 = arith.constant 0 : i32
    %c0_i32_36 = arith.constant 0 : i32
    %58 = tpu.memref_slice %arg6[%c0_i32_35, %c0_i32_36] : memref<8x128xf32, #tpu.memory_space<vmem>> -> memref<1x128xf32, #tpu.memory_space<vmem>>
    tpu.wait_dma2 semaphore(%arg7 : memref<!tpu.dma_semaphore, #tpu.memory_space<semaphore_mem>>) src(%57 : memref<1x128xf32, #tpu.memory_space<any>>) dst(%58 : memref<1x128xf32, #tpu.memory_space<vmem>>)
    %c1_i32_37 = arith.constant 1 : i32
    %c0_i32_38 = arith.constant 0 : i32
    %c0_i32_39 = arith.constant 0 : i32
    %59 = tpu.memref_slice %arg2[%c0_i32_38, %c0_i32_39] : memref<1162x128xf32, #tpu.memory_space<any>> -> memref<1x128xf32, #tpu.memory_space<any>>
    %c0_i32_40 = arith.constant 0 : i32
    %c0_i32_41 = arith.constant 0 : i32
    %60 = tpu.memref_slice %arg6[%c0_i32_40, %c0_i32_41] : memref<8x128xf32, #tpu.memory_space<vmem>> -> memref<1x128xf32, #tpu.memory_space<vmem>>
    tpu.wait_dma2 semaphore(%arg7 : memref<!tpu.dma_semaphore, #tpu.memory_space<semaphore_mem>>) src(%59 : memref<1x128xf32, #tpu.memory_space<any>>) dst(%60 : memref<1x128xf32, #tpu.memory_space<vmem>>)
    %c2_i32_42 = arith.constant 2 : i32
    %c0_i32_43 = arith.constant 0 : i32
    %c0_i32_44 = arith.constant 0 : i32
    %61 = tpu.memref_slice %arg2[%c0_i32_43, %c0_i32_44] : memref<1162x128xf32, #tpu.memory_space<any>> -> memref<1x128xf32, #tpu.memory_space<any>>
    %c0_i32_45 = arith.constant 0 : i32
    %c0_i32_46 = arith.constant 0 : i32
    %62 = tpu.memref_slice %arg6[%c0_i32_45, %c0_i32_46] : memref<8x128xf32, #tpu.memory_space<vmem>> -> memref<1x128xf32, #tpu.memory_space<vmem>>
    tpu.wait_dma2 semaphore(%arg7 : memref<!tpu.dma_semaphore, #tpu.memory_space<semaphore_mem>>) src(%61 : memref<1x128xf32, #tpu.memory_space<any>>) dst(%62 : memref<1x128xf32, #tpu.memory_space<vmem>>)
    %c3_i32_47 = arith.constant 3 : i32
    %c0_i32_48 = arith.constant 0 : i32
    %c0_i32_49 = arith.constant 0 : i32
    %63 = tpu.memref_slice %arg2[%c0_i32_48, %c0_i32_49] : memref<1162x128xf32, #tpu.memory_space<any>> -> memref<1x128xf32, #tpu.memory_space<any>>
    %c0_i32_50 = arith.constant 0 : i32
    %c0_i32_51 = arith.constant 0 : i32
    %64 = tpu.memref_slice %arg6[%c0_i32_50, %c0_i32_51] : memref<8x128xf32, #tpu.memory_space<vmem>> -> memref<1x128xf32, #tpu.memory_space<vmem>>
    tpu.wait_dma2 semaphore(%arg7 : memref<!tpu.dma_semaphore, #tpu.memory_space<semaphore_mem>>) src(%63 : memref<1x128xf32, #tpu.memory_space<any>>) dst(%64 : memref<1x128xf32, #tpu.memory_space<vmem>>)
    %c4_i32_52 = arith.constant 4 : i32
    %c0_i32_53 = arith.constant 0 : i32
    %c0_i32_54 = arith.constant 0 : i32
    %65 = tpu.memref_slice %arg2[%c0_i32_53, %c0_i32_54] : memref<1162x128xf32, #tpu.memory_space<any>> -> memref<1x128xf32, #tpu.memory_space<any>>
    %c0_i32_55 = arith.constant 0 : i32
    %c0_i32_56 = arith.constant 0 : i32
    %66 = tpu.memref_slice %arg6[%c0_i32_55, %c0_i32_56] : memref<8x128xf32, #tpu.memory_space<vmem>> -> memref<1x128xf32, #tpu.memory_space<vmem>>
    tpu.wait_dma2 semaphore(%arg7 : memref<!tpu.dma_semaphore, #tpu.memory_space<semaphore_mem>>) src(%65 : memref<1x128xf32, #tpu.memory_space<any>>) dst(%66 : memref<1x128xf32, #tpu.memory_space<vmem>>)
    %c5_i32_57 = arith.constant 5 : i32
    %c0_i32_58 = arith.constant 0 : i32
    %c0_i32_59 = arith.constant 0 : i32
    %67 = tpu.memref_slice %arg2[%c0_i32_58, %c0_i32_59] : memref<1162x128xf32, #tpu.memory_space<any>> -> memref<1x128xf32, #tpu.memory_space<any>>
    %c0_i32_60 = arith.constant 0 : i32
    %c0_i32_61 = arith.constant 0 : i32
    %68 = tpu.memref_slice %arg6[%c0_i32_60, %c0_i32_61] : memref<8x128xf32, #tpu.memory_space<vmem>> -> memref<1x128xf32, #tpu.memory_space<vmem>>
    tpu.wait_dma2 semaphore(%arg7 : memref<!tpu.dma_semaphore, #tpu.memory_space<semaphore_mem>>) src(%67 : memref<1x128xf32, #tpu.memory_space<any>>) dst(%68 : memref<1x128xf32, #tpu.memory_space<vmem>>)
    %c6_i32_62 = arith.constant 6 : i32
    %c0_i32_63 = arith.constant 0 : i32
    %c0_i32_64 = arith.constant 0 : i32
    %69 = tpu.memref_slice %arg2[%c0_i32_63, %c0_i32_64] : memref<1162x128xf32, #tpu.memory_space<any>> -> memref<1x128xf32, #tpu.memory_space<any>>
    %c0_i32_65 = arith.constant 0 : i32
    %c0_i32_66 = arith.constant 0 : i32
    %70 = tpu.memref_slice %arg6[%c0_i32_65, %c0_i32_66] : memref<8x128xf32, #tpu.memory_space<vmem>> -> memref<1x128xf32, #tpu.memory_space<vmem>>
    tpu.wait_dma2 semaphore(%arg7 : memref<!tpu.dma_semaphore, #tpu.memory_space<semaphore_mem>>) src(%69 : memref<1x128xf32, #tpu.memory_space<any>>) dst(%70 : memref<1x128xf32, #tpu.memory_space<vmem>>)
    %c7_i32_67 = arith.constant 7 : i32
    %c0_i32_68 = arith.constant 0 : i32
    %c0_i32_69 = arith.constant 0 : i32
    %71 = tpu.memref_slice %arg2[%c0_i32_68, %c0_i32_69] : memref<1162x128xf32, #tpu.memory_space<any>> -> memref<1x128xf32, #tpu.memory_space<any>>
    %c0_i32_70 = arith.constant 0 : i32
    %c0_i32_71 = arith.constant 0 : i32
    %72 = tpu.memref_slice %arg6[%c0_i32_70, %c0_i32_71] : memref<8x128xf32, #tpu.memory_space<vmem>> -> memref<1x128xf32, #tpu.memory_space<vmem>>
    tpu.wait_dma2 semaphore(%arg7 : memref<!tpu.dma_semaphore, #tpu.memory_space<semaphore_mem>>) src(%71 : memref<1x128xf32, #tpu.memory_space<any>>) dst(%72 : memref<1x128xf32, #tpu.memory_space<vmem>>)
    %c0 = arith.constant 0 : index
    %c0_72 = arith.constant 0 : index
    %73 = vector.load %arg6[%c0, %c0_72] : memref<8x128xf32, #tpu.memory_space<vmem>>, vector<8x128xf32>
    %c0_73 = arith.constant 0 : index
    %c0_74 = arith.constant 0 : index
    %74 = vector.load %arg3[%c0_73, %c0_74] : memref<128x1280xf32, #tpu.memory_space<vmem>>, vector<128x1280xf32>
    %cst = arith.constant dense<0.000000e+00> : vector<8x1280xf32>
    %75 = tpu.matmul %73, %74, %cst {dimension_numbers = #tpu.dot_dimension_numbers<[1], [0], [0], [1], [0, 0, 1, 1], [], []>} : vector<8x128xf32>, vector<128x1280xf32>, vector<8x1280xf32> -> vector<8x1280xf32>
    %c0_75 = arith.constant 0 : index
    %c0_76 = arith.constant 0 : index
    %76 = vector.load %arg4[%c0_75, %c0_76] : memref<1x1280xf32, #tpu.memory_space<vmem>>, vector<1x1280xf32>
    %77 = vector.broadcast %76 : vector<1x1280xf32> to vector<8x1280xf32>
    %78 = arith.addf %75, %77 : vector<8x1280xf32>
    %cst_77 = arith.constant dense<0xFF800000> : vector<8xf32>
    %79 = vector.multi_reduction <maximumf>, %78, %cst_77 [1] : vector<8x1280xf32> to vector<8xf32>
    %80 = vector.shape_cast %79 : vector<8xf32> to vector<8x1xf32>
    %81 = vector.broadcast %80 : vector<8x1xf32> to vector<8x1280xf32>
    %82 = arith.subf %78, %81 : vector<8x1280xf32>
    %83 = math.exp %82 : vector<8x1280xf32>
    %cst_78 = arith.constant dense<0.000000e+00> : vector<8xf32>
    %84 = vector.multi_reduction <add>, %83, %cst_78 [1] : vector<8x1280xf32> to vector<8xf32>
    %85 = vector.shape_cast %84 : vector<8xf32> to vector<8x1xf32>
    %86 = vector.broadcast %85 : vector<8x1xf32> to vector<8x1280xf32>
    %87 = arith.divf %83, %86 : vector<8x1280xf32>
    %c0_79 = arith.constant 0 : index
    %c0_80 = arith.constant 0 : index
    %88 = vector.load %arg5[%c0_79, %c0_80] : memref<8x1280xf32, #tpu.memory_space<vmem>>, vector<8x1280xf32>
    tpu.vector_store %arg5[%c0_79, %c0_80], %87 {strides = array<i32>} : memref<8x1280xf32, #tpu.memory_space<vmem>>, vector<8x1280xf32>,
    return
  }
  func.func @transform_1(%arg0: i32, %arg1: memref<8xi32, #tpu.memory_space<smem>>) -> (i32, i32) {
    %c0_i32 = arith.constant 0 : i32
    %c0_i32_0 = arith.constant 0 : i32
    %c0_i32_1 = arith.constant 0 : i32
    return %c0_i32, %c0_i32_0 : i32, i32
  }
  func.func @transform_2(%arg0: i32, %arg1: memref<8xi32, #tpu.memory_space<smem>>) -> (i32, i32) {
    %c0_i32 = arith.constant 0 : i32
    %c0_i32_0 = arith.constant 0 : i32
    %c0_i32_1 = arith.constant 0 : i32
    return %c0_i32, %c0_i32_0 : i32, i32
  }
  func.func @transform_3(%arg0: i32, %arg1: memref<8xi32, #tpu.memory_space<smem>>) -> (i32, i32) {
    %c0_i32 = arith.constant 0 : i32
    %c0_i32_0 = arith.constant 0 : i32
    return %arg0, %c0_i32 : i32, i32
  }
}

</mosaic_0001>

<llo_original>
// kernel: block_skipgram_forward.1
$region0: #{block_skipgram_forward.1}
  #allocation0 [shape = 'u32[]', space=smem, size = 0x4, offset = 0x4, fixed_abs, tag = 'smem constant byte address 0x4 - core index']
  #allocation1 [shape = 'u32[144,128]{1,0:T(1,128)}', space=vmem, size = 0x12000, scoped, tag = 'internal scratch']
  #allocation2 [shape = 'f32[8,128]{1,0:T(8,128)}', space=vmem, size = 0x1000, scoped, tag = 'scratch operand']
  #allocation3 [shape = 's32[1]{0}', space=sflag, size = 0x4, scoped, tag = 'scratch operand']
  #allocation4 [shape = 's32[1]{0}', space=sflag, size = 0x4, scoped, tag = 'scoped memory for block_skipgram_forward.1']
  #allocation5 [shape = 'u8[512]{0}', space=smem, size = 0x200, scoped, tag = 'prefetched SMEM operand 0']
  #allocation12 [shape = 's32[]', space=sflag, size = 0x4, offset = 0, fixed_abs, tag = 'sflag constant byte address 0x0 - dummy sync flag']
  #allocation13 [shape = 's32[]', space=sflag, size = 0x4, offset = 0, fixed_abs, tag = 'sflag constant byte address 0x0 - dummy sync flag']
  #allocation14 [shape = 'u32[]', space=smem, size = 0x4, offset = 0x44, fixed_abs, tag = 'smem constant byte address 0x44 - assertion arg 0']
  #allocation15 [shape = 'u32[]', space=smem, size = 0x4, offset = 0x48, fixed_abs, tag = 'smem constant byte address 0x48 - assertion arg 1']
  #allocation16 [shape = 's32[]', space=sflag, size = 0x4, offset = 0, fixed_abs, tag = 'sflag constant byte address 0x0 - dummy sync flag']
  #allocation17 [shape = 's32[]', space=sflag, size = 0x4, offset = 0, fixed_abs, tag = 'sflag constant byte address 0x0 - dummy sync flag']
  #allocation18 [shape = 's32[]', space=sflag, size = 0x4, offset = 0, fixed_abs, tag = 'sflag constant byte address 0x0 - dummy sync flag']
  #allocation19 [shape = 's32[]', space=sflag, size = 0x4, offset = 0, fixed_abs, tag = 'sflag constant byte address 0x0 - dummy sync flag']
  #allocation20 [shape = 's32[]', space=sflag, size = 0x4, offset = 0, fixed_abs, tag = 'sflag constant byte address 0x0 - dummy sync flag']
  #allocation21 [shape = 's32[]', space=sflag, size = 0x4, offset = 0, fixed_abs, tag = 'sflag constant byte address 0x0 - dummy sync flag']
  #allocation22 [shape = 's32[]', space=sflag, size = 0x4, offset = 0, fixed_abs, tag = 'sflag constant byte address 0x0 - dummy sync flag']
  #allocation23 [shape = 's32[]', space=sflag, size = 0x4, offset = 0, fixed_abs, tag = 'sflag constant byte address 0x0 - dummy sync flag']
  #allocation24 [shape = 's32[]', space=sflag, size = 0x4, offset = 0, fixed_abs, tag = 'sflag constant byte address 0x0 - dummy sync flag']
  #allocation25 [shape = 's32[]', space=sflag, size = 0x4, offset = 0, fixed_abs, tag = 'sflag constant byte address 0x0 - dummy sync flag']
  #allocation26 [shape = 's32[]', space=sflag, size = 0x4, offset = 0, fixed_abs, tag = 'sflag constant byte address 0x0 - dummy sync flag']
  #allocation27 [shape = 's32[]', space=sflag, size = 0x4, offset = 0, fixed_abs, tag = 'sflag constant byte address 0x0 - dummy sync flag']
  #allocation28 [shape = 's32[]', space=sflag, size = 0x4, offset = 0, fixed_abs, tag = 'sflag constant byte address 0x0 - dummy sync flag']
  #allocation29 [shape = 's32[]', space=sflag, size = 0x4, offset = 0, fixed_abs, tag = 'sflag constant byte address 0x0 - dummy sync flag']
  %s0 = inlined_call_operand.hbm [shape: s32[8], index: 0, kind: input, shape index: {}]
  %s1 = inlined_call_operand.hbm [shape: f32[1162,128], index: 1, kind: input, shape index: {}]
  %s2 = inlined_call_operand.hbm [shape: f32[128,1280], index: 2, kind: input, shape index: {}]
  %s3 = inlined_call_operand.hbm [shape: f32[1,1280], index: 3, kind: input, shape index: {}]
  %s4 = inlined_call_operand.hbm [shape: f32[8,1280], index: 4, kind: output, shape index: {}]
  %s5 = sld [smem:[#allocation0]]
  $region58: #{block_skipgram_forward.1} parent=0
    _
  %s7 = ssub.s32 1, %s5
  %s8 = scalar_select 0, %s7, %s5
  %10 = dma.hbm_to_smem %s0, 16, [#allocation5], [#allocation4]
  %11 = dma.done [#allocation4], 16
  %12 = sfence
  $region1: #{block_skipgram_forward.1} parent=0
    #allocation6 [shape = 'u8[655360]{0}', space=vmem, size = 0xa0000, scoped, tag = 'input window, operand 2, single buffered']
    #allocation7 [shape = 's32[1]{0}', space=sflag, size = 0x4, scoped, tag = 'scoped memory for block_skipgram_forward.1']
    #allocation8 [shape = 's32[1]{0}', space=sflag, size = 0x4, scoped, tag = 'scoped memory for block_skipgram_forward.1']
    #allocation9 [shape = 'u8[5120]{0}', space=vmem, size = 0x1400, scoped, tag = 'input window, operand 3, single buffered']
    #allocation10 [shape = 's32[1]{0}', space=sflag, size = 0x4, scoped, tag = 'scoped memory for block_skipgram_forward.1']
    #allocation11 [shape = 'u8[40960]{0}', space=vmem, size = 0xa000, scoped, tag = 'output window, operand 0, single buffered']
    %13 = vsyncpa [#allocation7], 0
    %14 = vsyncpa [#allocation10], 0
    %15 = vsyncpa [#allocation8], 0
    // Predicated region
    $region2: #{block_skipgram_forward.1} parent=1 // pred_check
      _
    $region3: #{block_skipgram_forward.1} parent=1 // pred_check_branch
      %17 = sbr.rel (0) target = $region5
    $region4: #{block_skipgram_forward.1} parent=1 // pred_region
      %s19 = ssub.s32 20480, 20480
      %20 = vsyncadd [#allocation7], %s19
      %s21 = sshll.u32 [#allocation6], 4
      %s22 = int_to_ptr.vmem [resolvable:$true] %s21
      %27 = dma.hbm_to_vmem [thread:$0]  %s2, 20480, %s22, [#allocation7], 1280, 1280, 80
    $region5: #{block_skipgram_forward.1} parent=1 // pred_fallthru
      _
    // Predicated region
    $region6: #{block_skipgram_forward.1} parent=1 // pred_check
      _
    $region7: #{block_skipgram_forward.1} parent=1 // pred_check_branch
      %29 = sbr.rel (0) target = $region9
    $region8: #{block_skipgram_forward.1} parent=1 // pred_region
      %s31 = ssub.s32 160, 160
      %32 = vsyncadd [#allocation10], %s31
      %s34 = sshll.u32 [#allocation9], 4
      %s35 = int_to_ptr.vmem [resolvable:$true] %s34
      %37 = dma.hbm_to_vmem [thread:$0]  %s3, 160, %s35, [#allocation10]
    $region9: #{block_skipgram_forward.1} parent=1 // pred_fallthru
      _
    // Predicated region
    $region10: #{block_skipgram_forward.1} parent=1 // pred_check
      _
    $region11: #{block_skipgram_forward.1} parent=1 // pred_check_branch
      %39 = sbr.rel (0) target = $region13
    $region12: #{block_skipgram_forward.1} parent=1 // pred_region
      %40 = dma.done [#allocation7], 20480
    $region13: #{block_skipgram_forward.1} parent=1 // pred_fallthru
      _
    // Predicated region
    $region14: #{block_skipgram_forward.1} parent=1 // pred_check
      _
    $region15: #{block_skipgram_forward.1} parent=1 // pred_check_branch
      %42 = sbr.rel (0) target = $region17
    $region16: #{block_skipgram_forward.1} parent=1 // pred_region
      %43 = dma.done [#allocation10], 160
    $region17: #{block_skipgram_forward.1} parent=1 // pred_fallthru
      _
    %s44 = smul.u32 0, 8
    %s45 = sld [smem:[#allocation5 + %s44]]
    %p46 = scmp.gt.s32.totalorder %s45, 0
    %s47 = scalar_select %p46, %s45, 0
    %p48 = scmp.lt.s32.totalorder %s47, 1161
    %s49 = scalar_select %p48, %s47, 1161
    %s50 = smul.addr %s49, 16
    %s51 = scalar_lea.hbm %s1, %s50
    // Predicated region
    $region18: #{block_skipgram_forward.1} parent=1 // pred_check
      _
    $region19: #{block_skipgram_forward.1} parent=1 // pred_check_branch
      %53 = sbr.rel target = $region21
    $region20: #{block_skipgram_forward.1} parent=1 // pred_region
      %54 = sst [smem:[#allocation14]] [#allocation13]
      %55 = sst [smem:[#allocation15]] [#allocation12]
    $region21: #{block_skipgram_forward.1} parent=1 // pred_fallthru
      _
    %57 = shalt.err (0)
    %s59 = sshll.u32 [#allocation2], 4
    %s60 = int_to_ptr.vmem [resolvable:$true] %s59
    %62 = dma.hbm_to_vmem [thread:$0]  %s51, 16, %s60, [#allocation3]
    %s63 = sadd.s32 %s44, 1
    %s64 = sld [smem:[#allocation5 + %s63]]
    %p65 = scmp.gt.s32.totalorder %s64, 0
    %s66 = scalar_select %p65, %s64, 0
    %p67 = scmp.lt.s32.totalorder %s66, 1161
    %s68 = scalar_select %p67, %s66, 1161
    %s69 = smul.addr %s68, 16
    %s70 = scalar_lea.hbm %s1, %s69
    %s71 = scalar_lea.vmem [#allocation2], 1
    // Predicated region
    $region22: #{block_skipgram_forward.1} parent=1 // pred_check
      _
    $region23: #{block_skipgram_forward.1} parent=1 // pred_check_branch
      %73 = sbr.rel target = $region25
    $region24: #{block_skipgram_forward.1} parent=1 // pred_region
      %74 = sst [smem:[#allocation14]] [#allocation17]
      %75 = sst [smem:[#allocation15]] [#allocation16]
    $region25: #{block_skipgram_forward.1} parent=1 // pred_fallthru
      _
    %77 = shalt.err (0)
    %s79 = sshll.u32 %s71, 4
    %s80 = int_to_ptr.vmem [resolvable:$true] %s79
    %82 = dma.hbm_to_vmem [thread:$0]  %s70, 16, %s80, [#allocation3]
    %s83 = sadd.s32 %s44, 2
    %s84 = sld [smem:[#allocation5 + %s83]]
    %p85 = scmp.gt.s32.totalorder %s84, 0
    %s86 = scalar_select %p85, %s84, 0
    %p87 = scmp.lt.s32.totalorder %s86, 1161
    %s88 = scalar_select %p87, %s86, 1161
    %s89 = smul.addr %s88, 16
    %s90 = scalar_lea.hbm %s1, %s89
    %s91 = scalar_lea.vmem [#allocation2], 2
    // Predicated region
    $region26: #{block_skipgram_forward.1} parent=1 // pred_check
      _
    $region27: #{block_skipgram_forward.1} parent=1 // pred_check_branch
      %93 = sbr.rel target = $region29
    $region28: #{block_skipgram_forward.1} parent=1 // pred_region
      %94 = sst [smem:[#allocation14]] [#allocation19]
      %95 = sst [smem:[#allocation15]] [#allocation18]
    $region29: #{block_skipgram_forward.1} parent=1 // pred_fallthru
      _
    %97 = shalt.err (0)
    %s99 = sshll.u32 %s91, 4
    %s100 = int_to_ptr.vmem [resolvable:$true] %s99
    %102 = dma.hbm_to_vmem [thread:$0]  %s90, 16, %s100, [#allocation3]
    %s103 = sadd.s32 %s44, 3
    %s104 = sld [smem:[#allocation5 + %s103]]
    %p105 = scmp.gt.s32.totalorder %s104, 0
    %s106 = scalar_select %p105, %s104, 0
    %p107 = scmp.lt.s32.totalorder %s106, 1161
    %s108 = scalar_select %p107, %s106, 1161
    %s109 = smul.addr %s108, 16
    %s110 = scalar_lea.hbm %s1, %s109
    %s111 = scalar_lea.vmem [#allocation2], 3
    // Predicated region
    $region30: #{block_skipgram_forward.1} parent=1 // pred_check
      _
    $region31: #{block_skipgram_forward.1} parent=1 // pred_check_branch
      %113 = sbr.rel target = $region33
    $region32: #{block_skipgram_forward.1} parent=1 // pred_region
      %114 = sst [smem:[#allocation14]] [#allocation21]
      %115 = sst [smem:[#allocation15]] [#allocation20]
    $region33: #{block_skipgram_forward.1} parent=1 // pred_fallthru
      _
    %117 = shalt.err (0)
    %s119 = sshll.u32 %s111, 4
    %s120 = int_to_ptr.vmem [resolvable:$true] %s119
    %122 = dma.hbm_to_vmem [thread:$0]  %s110, 16, %s120, [#allocation3]
    %s123 = sadd.s32 %s44, 4
    %s124 = sld [smem:[#allocation5 + %s123]]
    %p125 = scmp.gt.s32.totalorder %s124, 0
    %s126 = scalar_select %p125, %s124, 0
    %p127 = scmp.lt.s32.totalorder %s126, 1161
    %s128 = scalar_select %p127, %s126, 1161
    %s129 = smul.addr %s128, 16
    %s130 = scalar_lea.hbm %s1, %s129
    %s131 = scalar_lea.vmem [#allocation2], 4
    // Predicated region
    $region34: #{block_skipgram_forward.1} parent=1 // pred_check
      _
    $region35: #{block_skipgram_forward.1} parent=1 // pred_check_branch
      %133 = sbr.rel target = $region37
    $region36: #{block_skipgram_forward.1} parent=1 // pred_region
      %134 = sst [smem:[#allocation14]] [#allocation23]
      %135 = sst [smem:[#allocation15]] [#allocation22]
    $region37: #{block_skipgram_forward.1} parent=1 // pred_fallthru
      _
    %137 = shalt.err (0)
    %s139 = sshll.u32 %s131, 4
    %s140 = int_to_ptr.vmem [resolvable:$true] %s139
    %142 = dma.hbm_to_vmem [thread:$0]  %s130, 16, %s140, [#allocation3]
    %s143 = sadd.s32 %s44, 5
    %s144 = sld [smem:[#allocation5 + %s143]]
    %p145 = scmp.gt.s32.totalorder %s144, 0
    %s146 = scalar_select %p145, %s144, 0
    %p147 = scmp.lt.s32.totalorder %s146, 1161
    %s148 = scalar_select %p147, %s146, 1161
    %s149 = smul.addr %s148, 16
    %s150 = scalar_lea.hbm %s1, %s149
    %s151 = scalar_lea.vmem [#allocation2], 5
    // Predicated region
    $region38: #{block_skipgram_forward.1} parent=1 // pred_check
      _
    $region39: #{block_skipgram_forward.1} parent=1 // pred_check_branch
      %153 = sbr.rel target = $region41
    $region40: #{block_skipgram_forward.1} parent=1 // pred_region
      %154 = sst [smem:[#allocation14]] [#allocation25]
      %155 = sst [smem:[#allocation15]] [#allocation24]
    $region41: #{block_skipgram_forward.1} parent=1 // pred_fallthru
      _
    %157 = shalt.err (0)
    %s159 = sshll.u32 %s151, 4
    %s160 = int_to_ptr.vmem [resolvable:$true] %s159
    %162 = dma.hbm_to_vmem [thread:$0]  %s150, 16, %s160, [#allocation3]
    %s163 = sadd.s32 %s44, 6
    %s164 = sld [smem:[#allocation5 + %s163]]
    %p165 = scmp.gt.s32.totalorder %s164, 0
    %s166 = scalar_select %p165, %s164, 0
    %p167 = scmp.lt.s32.totalorder %s166, 1161
    %s168 = scalar_select %p167, %s166, 1161
    %s169 = smul.addr %s168, 16
    %s170 = scalar_lea.hbm %s1, %s169
    %s171 = scalar_lea.vmem [#allocation2], 6
    // Predicated region
    $region42: #{block_skipgram_forward.1} parent=1 // pred_check
      _
    $region43: #{block_skipgram_forward.1} parent=1 // pred_check_branch
      %173 = sbr.rel target = $region45
    $region44: #{block_skipgram_forward.1} parent=1 // pred_region
      %174 = sst [smem:[#allocation14]] [#allocation27]
      %175 = sst [smem:[#allocation15]] [#allocation26]
    $region45: #{block_skipgram_forward.1} parent=1 // pred_fallthru
      _
    %177 = shalt.err (0)
    %s179 = sshll.u32 %s171, 4
    %s180 = int_to_ptr.vmem [resolvable:$true] %s179
    %182 = dma.hbm_to_vmem [thread:$0]  %s170, 16, %s180, [#allocation3]
    %s183 = sadd.s32 %s44, 7
    %s184 = sld [smem:[#allocation5 + %s183]]
    %p185 = scmp.gt.s32.totalorder %s184, 0
    %s186 = scalar_select %p185, %s184, 0
    %p187 = scmp.lt.s32.totalorder %s186, 1161
    %s188 = scalar_select %p187, %s186, 1161
    %s189 = smul.addr %s188, 16
    %s190 = scalar_lea.hbm %s1, %s189
    %s191 = scalar_lea.vmem [#allocation2], 7
    // Predicated region
    $region46: #{block_skipgram_forward.1} parent=1 // pred_check
      _
    $region47: #{block_skipgram_forward.1} parent=1 // pred_check_branch
      %193 = sbr.rel target = $region49
    $region48: #{block_skipgram_forward.1} parent=1 // pred_region
      %194 = sst [smem:[#allocation14]] [#allocation29]
      %195 = sst [smem:[#allocation15]] [#allocation28]
    $region49: #{block_skipgram_forward.1} parent=1 // pred_fallthru
      _
    %197 = shalt.err (0)
    %s199 = sshll.u32 %s191, 4
    %s200 = int_to_ptr.vmem [resolvable:$true] %s199
    %202 = dma.hbm_to_vmem [thread:$0]  %s190, 16, %s200, [#allocation3]
    %s203 = smul.u32 1, 1
    %s204 = sshll.u32 %s203, 4
    %205 = dma.done [#allocation3], %s204
    %s206 = sshll.u32 %s203, 4
    %207 = dma.done [#allocation3], %s206
    %s208 = sshll.u32 %s203, 4
    %209 = dma.done [#allocation3], %s208
    %s210 = sshll.u32 %s203, 4
    %211 = dma.done [#allocation3], %s210
    %s212 = sshll.u32 %s203, 4
    %213 = dma.done [#allocation3], %s212
    %s214 = sshll.u32 %s203, 4
    %215 = dma.done [#allocation3], %s214
    %s216 = sshll.u32 %s203, 4
    %217 = dma.done [#allocation3], %s216
    %s218 = sshll.u32 %s203, 4
    %219 = dma.done [#allocation3], %s218
    %v220 = vld [vmem:[#allocation2] sm:$0xff]
    %v221 = vld [vmem:[#allocation6] sm:$0xff]
    %v222 = vld [vmem:[#allocation6 + $0x8] sm:$0xff]
    %v223 = vld [vmem:[#allocation6 + $0x10] sm:$0xff]
    %v224 = vld [vmem:[#allocation6 + $0x18] sm:$0xff]
    %v225 = vld [vmem:[#allocation6 + $0x20] sm:$0xff]
    %v226 = vld [vmem:[#allocation6 + $0x28] sm:$0xff]
    %v227 = vld [vmem:[#allocation6 + $0x30] sm:$0xff]
    %v228 = vld [vmem:[#allocation6 + $0x38] sm:$0xff]
    %v229 = vld [vmem:[#allocation6 + $0x40] sm:$0xff]
    %v230 = vld [vmem:[#allocation6 + $0x48] sm:$0xff]
    %v231 = vld [vmem:[#allocation6 + $0x50] sm:$0xff]
    %v232 = vld [vmem:[#allocation6 + $0x58] sm:$0xff]
    %v233 = vld [vmem:[#allocation6 + $0x60] sm:$0xff]
    %v234 = vld [vmem:[#allocation6 + $0x68] sm:$0xff]
    %v235 = vld [vmem:[#allocation6 + $0x70] sm:$0xff]
    %v236 = vld [vmem:[#allocation6 + $0x78] sm:$0xff]
    %v237 = vld [vmem:[#allocation6 + $0x80] sm:$0xff]
    %v238 = vld [vmem:[#allocation6 + $0x88] sm:$0xff]
    %v239 = vld [vmem:[#allocation6 + $0x90] sm:$0xff]
    %v240 = vld [vmem:[#allocation6 + $0x98] sm:$0xff]
    %v241 = vld [vmem:[#allocation6 + $0xa0] sm:$0xff]
    %v242 = vld [vmem:[#allocation6 + $0xa8] sm:$0xff]
    %v243 = vld [vmem:[#allocation6 + $0xb0] sm:$0xff]
    %v244 = vld [vmem:[#allocation6 + $0xb8] sm:$0xff]
    %v245 = vld [vmem:[#allocation6 + $0xc0] sm:$0xff]
    %v246 = vld [vmem:[#allocation6 + $0xc8] sm:$0xff]
    %v247 = vld [vmem:[#allocation6 + $0xd0] sm:$0xff]
    %v248 = vld [vmem:[#allocation6 + $0xd8] sm:$0xff]
    %v249 = vld [vmem:[#allocation6 + $0xe0] sm:$0xff]
    %v250 = vld [vmem:[#allocation6 + $0xe8] sm:$0xff]
    %v251 = vld [vmem:[#allocation6 + $0xf0] sm:$0xff]
    %v252 = vld [vmem:[#allocation6 + $0xf8] sm:$0xff]
    %v253 = vld [vmem:[#allocation6 + $0x100] sm:$0xff]
    %v254 = vld [vmem:[#allocation6 + $0x108] sm:$0xff]
    %v255 = vld [vmem:[#allocation6 + $0x110] sm:$0xff]
    %v256 = vld [vmem:[#allocation6 + $0x118] sm:$0xff]
    %v257 = vld [vmem:[#allocation6 + $0x120] sm:$0xff]
    %v258 = vld [vmem:[#allocation6 + $0x128] sm:$0xff]
    %v259 = vld [vmem:[#allocation6 + $0x130] sm:$0xff]
    %v260 = vld [vmem:[#allocation6 + $0x138] sm:$0xff]
    %v261 = vld [vmem:[#allocation6 + $0x140] sm:$0xff]
    %v262 = vld [vmem:[#allocation6 + $0x148] sm:$0xff]
    %v263 = vld [vmem:[#allocation6 + $0x150] sm:$0xff]
    %v264 = vld [vmem:[#allocation6 + $0x158] sm:$0xff]
    %v265 = vld [vmem:[#allocation6 + $0x160] sm:$0xff]
    %v266 = vld [vmem:[#allocation6 + $0x168] sm:$0xff]
    %v267 = vld [vmem:[#allocation6 + $0x170] sm:$0xff]
    %v268 = vld [vmem:[#allocation6 + $0x178] sm:$0xff]
    %v269 = vld [vmem:[#allocation6 + $0x180] sm:$0xff]
    %v270 = vld [vmem:[#allocation6 + $0x188] sm:$0xff]
    %v271 = vld [vmem:[#allocation6 + $0x190] sm:$0xff]
    %v272 = vld [vmem:[#allocation6 + $0x198] sm:$0xff]
    %v273 = vld [vmem:[#allocation6 + $0x1a0] sm:$0xff]
    %v274 = vld [vmem:[#allocation6 + $0x1a8] sm:$0xff]
    %v275 = vld [vmem:[#allocation6 + $0x1b0] sm:$0xff]
    %v276 = vld [vmem:[#allocation6 + $0x1b8] sm:$0xff]
    %v277 = vld [vmem:[#allocation6 + $0x1c0] sm:$0xff]
    %v278 = vld [vmem:[#allocation6 + $0x1c8] sm:$0xff]
    %v279 = vld [vmem:[#allocation6 + $0x1d0] sm:$0xff]
    %v280 = vld [vmem:[#allocation6 + $0x1d8] sm:$0xff]
    %v281 = vld [vmem:[#allocation6 + $0x1e0] sm:$0xff]
    %v282 = vld [vmem:[#allocation6 + $0x1e8] sm:$0xff]
    %v283 = vld [vmem:[#allocation6 + $0x1f0] sm:$0xff]
    %v284 = vld [vmem:[#allocation6 + $0x1f8] sm:$0xff]
    %v285 = vld [vmem:[#allocation6 + $0x200] sm:$0xff]
    %v286 = vld [vmem:[#allocation6 + $0x208] sm:$0xff]
    %v287 = vld [vmem:[#allocation6 + $0x210] sm:$0xff]
    %v288 = vld [vmem:[#allocation6 + $0x218] sm:$0xff]
    %v289 = vld [vmem:[#allocation6 + $0x220] sm:$0xff]
    %v290 = vld [vmem:[#allocation6 + $0x228] sm:$0xff]
    %v291 = vld [vmem:[#allocation6 + $0x230] sm:$0xff]
    %v292 = vld [vmem:[#allocation6 + $0x238] sm:$0xff]
    %v293 = vld [vmem:[#allocation6 + $0x240] sm:$0xff]
    %v294 = vld [vmem:[#allocation6 + $0x248] sm:$0xff]
    %v295 = vld [vmem:[#allocation6 + $0x250] sm:$0xff]
    %v296 = vld [vmem:[#allocation6 + $0x258] sm:$0xff]
    %v297 = vld [vmem:[#allocation6 + $0x260] sm:$0xff]
    %v298 = vld [vmem:[#allocation6 + $0x268] sm:$0xff]
    %v299 = vld [vmem:[#allocation6 + $0x270] sm:$0xff]
    %v300 = vld [vmem:[#allocation6 + $0x278] sm:$0xff]
    %v301 = vld [vmem:[#allocation6 + $0x280] sm:$0xff]
    %v302 = vld [vmem:[#allocation6 + $0x288] sm:$0xff]
    %v303 = vld [vmem:[#allocation6 + $0x290] sm:$0xff]
    %v304 = vld [vmem:[#allocation6 + $0x298] sm:$0xff]
    %v305 = vld [vmem:[#allocation6 + $0x2a0] sm:$0xff]
    %v306 = vld [vmem:[#allocation6 + $0x2a8] sm:$0xff]
    %v307 = vld [vmem:[#allocation6 + $0x2b0] sm:$0xff]
    %v308 = vld [vmem:[#allocation6 + $0x2b8] sm:$0xff]
    %v309 = vld [vmem:[#allocation6 + $0x2c0] sm:$0xff]
    %v310 = vld [vmem:[#allocation6 + $0x2c8] sm:$0xff]
    %v311 = vld [vmem:[#allocation6 + $0x2d0] sm:$0xff]
    %v312 = vld [vmem:[#allocation6 + $0x2d8] sm:$0xff]
    %v313 = vld [vmem:[#allocation6 + $0x2e0] sm:$0xff]
    %v314 = vld [vmem:[#allocation6 + $0x2e8] sm:$0xff]
    %v315 = vld [vmem:[#allocation6 + $0x2f0] sm:$0xff]
    %v316 = vld [vmem:[#allocation6 + $0x2f8] sm:$0xff]
    %v317 = vld [vmem:[#allocation6 + $0x300] sm:$0xff]
    %v318 = vld [vmem:[#allocation6 + $0x308] sm:$0xff]
    %v319 = vld [vmem:[#allocation6 + $0x310] sm:$0xff]
    %v320 = vld [vmem:[#allocation6 + $0x318] sm:$0xff]
    %v321 = vld [vmem:[#allocation6 + $0x320] sm:$0xff]
    %v322 = vld [vmem:[#allocation6 + $0x328] sm:$0xff]
    %v323 = vld [vmem:[#allocation6 + $0x330] sm:$0xff]
    %v324 = vld [vmem:[#allocation6 + $0x338] sm:$0xff]
    %v325 = vld [vmem:[#allocation6 + $0x340] sm:$0xff]
    %v326 = vld [vmem:[#allocation6 + $0x348] sm:$0xff]
    %v327 = vld [vmem:[#allocation6 + $0x350] sm:$0xff]
    %v328 = vld [vmem:[#allocation6 + $0x358] sm:$0xff]
    %v329 = vld [vmem:[#allocation6 + $0x360] sm:$0xff]
    %v330 = vld [vmem:[#allocation6 + $0x368] sm:$0xff]
    %v331 = vld [vmem:[#allocation6 + $0x370] sm:$0xff]
    %v332 = vld [vmem:[#allocation6 + $0x378] sm:$0xff]
    %v333 = vld [vmem:[#allocation6 + $0x380] sm:$0xff]
    %v334 = vld [vmem:[#allocation6 + $0x388] sm:$0xff]
    %v335 = vld [vmem:[#allocation6 + $0x390] sm:$0xff]
    %v336 = vld [vmem:[#allocation6 + $0x398] sm:$0xff]
    %v337 = vld [vmem:[#allocation6 + $0x3a0] sm:$0xff]
    %v338 = vld [vmem:[#allocation6 + $0x3a8] sm:$0xff]
    %v339 = vld [vmem:[#allocation6 + $0x3b0] sm:$0xff]
    %v340 = vld [vmem:[#allocation6 + $0x3b8] sm:$0xff]
    %v341 = vld [vmem:[#allocation6 + $0x3c0] sm:$0xff]
    %v342 = vld [vmem:[#allocation6 + $0x3c8] sm:$0xff]
    %v343 = vld [vmem:[#allocation6 + $0x3d0] sm:$0xff]
    %v344 = vld [vmem:[#allocation6 + $0x3d8] sm:$0xff]
    %v345 = vld [vmem:[#allocation6 + $0x3e0] sm:$0xff]
    %v346 = vld [vmem:[#allocation6 + $0x3e8] sm:$0xff]
    %v347 = vld [vmem:[#allocation6 + $0x3f0] sm:$0xff]
    %v348 = vld [vmem:[#allocation6 + $0x3f8] sm:$0xff]
    %v349 = vld [vmem:[#allocation6 + $0x400] sm:$0xff]
    %v350 = vld [vmem:[#allocation6 + $0x408] sm:$0xff]
    %v351 = vld [vmem:[#allocation6 + $0x410] sm:$0xff]
    %v352 = vld [vmem:[#allocation6 + $0x418] sm:$0xff]
    %v353 = vld [vmem:[#allocation6 + $0x420] sm:$0xff]
    %v354 = vld [vmem:[#allocation6 + $0x428] sm:$0xff]
    %v355 = vld [vmem:[#allocation6 + $0x430] sm:$0xff]
    %v356 = vld [vmem:[#allocation6 + $0x438] sm:$0xff]
    %v357 = vld [vmem:[#allocation6 + $0x440] sm:$0xff]
    %v358 = vld [vmem:[#allocation6 + $0x448] sm:$0xff]
    %v359 = vld [vmem:[#allocation6 + $0x450] sm:$0xff]
    %v360 = vld [vmem:[#allocation6 + $0x458] sm:$0xff]
    %v361 = vld [vmem:[#allocation6 + $0x460] sm:$0xff]
    %v362 = vld [vmem:[#allocation6 + $0x468] sm:$0xff]
    %v363 = vld [vmem:[#allocation6 + $0x470] sm:$0xff]
    %v364 = vld [vmem:[#allocation6 + $0x478] sm:$0xff]
    %v365 = vld [vmem:[#allocation6 + $0x480] sm:$0xff]
    %v366 = vld [vmem:[#allocation6 + $0x488] sm:$0xff]
    %v367 = vld [vmem:[#allocation6 + $0x490] sm:$0xff]
    %v368 = vld [vmem:[#allocation6 + $0x498] sm:$0xff]
    %v369 = vld [vmem:[#allocation6 + $0x4a0] sm:$0xff]
    %v370 = vld [vmem:[#allocation6 + $0x4a8] sm:$0xff]
    %v371 = vld [vmem:[#allocation6 + $0x4b0] sm:$0xff]
    %v372 = vld [vmem:[#allocation6 + $0x4b8] sm:$0xff]
    %v373 = vld [vmem:[#allocation6 + $0x4c0] sm:$0xff]
    %v374 = vld [vmem:[#allocation6 + $0x4c8] sm:$0xff]
    %v375 = vld [vmem:[#allocation6 + $0x4d0] sm:$0xff]
    %v376 = vld [vmem:[#allocation6 + $0x4d8] sm:$0xff]
    %v377 = vld [vmem:[#allocation6 + $0x4e0] sm:$0xff]
    %v378 = vld [vmem:[#allocation6 + $0x4e8] sm:$0xff]
    %v379 = vld [vmem:[#allocation6 + $0x4f0] sm:$0xff]
    %v380 = vld [vmem:[#allocation6 + $0x4f8] sm:$0xff]
    %v381 = vld [vmem:[#allocation9] sm:$0xff]
    %v382 = vld [vmem:[#allocation9 + $0x8] sm:$0x3]
    %v385 = vlaneseq
    %v386 = vshrl.u32 %v385, 7
    %v387 = vsub.s32 0, %v386
    %v388 = vrot.slane %v381, %v387
    %v389 = vlaneseq
    %v390 = vshrl.u32 %v389, 7
    %v391 = vsub.s32 1, %v390
    %v392 = vrot.slane %v381, %v391
    %v393 = vlaneseq
    %v394 = vshrl.u32 %v393, 7
    %v395 = vsub.s32 2, %v394
    %v396 = vrot.slane %v381, %v395
    %v397 = vlaneseq
    %v398 = vshrl.u32 %v397, 7
    %v399 = vsub.s32 3, %v398
    %v400 = vrot.slane %v381, %v399
    %v401 = vlaneseq
    %v402 = vshrl.u32 %v401, 7
    %v403 = vsub.s32 4, %v402
    %v404 = vrot.slane %v381, %v403
    %v405 = vlaneseq
    %v406 = vshrl.u32 %v405, 7
    %v407 = vsub.s32 5, %v406
    %v408 = vrot.slane %v381, %v407
    %v409 = vlaneseq
    %v410 = vshrl.u32 %v409, 7
    %v411 = vsub.s32 6, %v410
    %v412 = vrot.slane %v381, %v411
    %v413 = vlaneseq
    %v414 = vshrl.u32 %v413, 7
    %v415 = vsub.s32 7, %v414
    %v416 = vrot.slane %v381, %v415
    %v417 = vlaneseq
    %v418 = vshrl.u32 %v417, 7
    %v419 = vsub.s32 0, %v418
    %v420 = vrot.slane %v382, %v419
    %v421 = vlaneseq
    %v422 = vshrl.u32 %v421, 7
    %v423 = vsub.s32 1, %v422
    %v424 = vrot.slane %v382, %v423
    %435 = vmatprep.subr.mxu0 %v372
    %436 = vmatpush1.msra.mxu0 %v371
    %437 = vmatprep.subr.mxu0 %v362
    %438 = vmatpush1.msra.mxu0 %v361
    %439 = vmatprep.subr.mxu0 %v352
    %440 = vmatpush1.msra.mxu0 %v351
    %441 = vmatprep.subr.mxu0 %v342
    %442 = vmatpush1.msra.mxu0 %v341
    %443 = vmatprep.subr.mxu0 %v332
    %444 = vmatpush1.msra.mxu0 %v331
    %445 = vmatprep.subr.mxu0 %v322
    %446 = vmatpush1.msra.mxu0 %v321
    %447 = vmatprep.subr.mxu0 %v312
    %448 = vmatpush1.msra.mxu0 %v311
    %449 = vmatprep.subr.mxu0 %v302
    %450 = vmatpush1.msra.mxu0 %v301
    %451 = vmatprep.subr.mxu0 %v292
    %452 = vmatpush1.msra.mxu0 %v291
    %453 = vmatprep.subr.mxu0 %v282
    %454 = vmatpush1.msra.mxu0 %v281
    %455 = vmatprep.subr.mxu0 %v272
    %456 = vmatpush1.msra.mxu0 %v271
    %457 = vmatprep.subr.mxu0 %v262
    %458 = vmatpush1.msra.mxu0 %v261
    %459 = vmatprep.subr.mxu0 %v252
    %460 = vmatpush1.msra.mxu0 %v251
    %461 = vmatprep.subr.mxu0 %v242
    %462 = vmatpush1.msra.mxu0 %v241
    %463 = vmatprep.subr.mxu0 %v232
    %464 = vmatpush1.msra.mxu0 %v231
    %465 = vmatprep.subr.mxu0 %v222
    %466 = vmatpush1.msra.mxu0 %v221
    %467 = vmatprep.subr.mxu0 0.0
    %468 = vmatpush2.msra.mxu0 0.0
    %469 = vmatprep.subr.mxu0 0.0
    %470 = vmatpush2.msra.mxu0 0.0
    %471 = vmatprep.subr.mxu0 0.0
    %472 = vmatpush2.msra.mxu0 0.0
    %473 = vmatprep.subr.mxu0 0.0
    %474 = vmatpush2.msra.mxu0 0.0
    %475 = vmatprep.subr.mxu0 0.0
    %476 = vmatpush2.msra.mxu0 0.0
    %477 = vmatprep.subr.mxu0 0.0
    %478 = vmatpush2.msra.mxu0 0.0
    %479 = vmatprep.subr.mxu0 0.0
    %480 = vmatpush2.msra.mxu0 0.0
    %481 = vmatprep.subr.mxu0 0.0
    %482 = vmatpush2.msra.mxu0 0.0
    %483 = vmatprep.subr.mxu0 0.0
    %484 = vmatpush2.msra.mxu0 0.0
    %485 = vmatprep.subr.mxu0 0.0
    %486 = vmatpush2.msra.mxu0 0.0
    %487 = vmatprep.subr.mxu0 0.0
    %488 = vmatpush2.msra.mxu0 0.0
    %489 = vmatprep.subr.mxu0 0.0
    %490 = vmatpush2.msra.mxu0 0.0
    %491 = vmatprep.subr.mxu0 0.0
    %492 = vmatpush2.msra.mxu0 0.0
    %493 = vmatprep.subr.mxu0 0.0
    %494 = vmatpush2.msra.mxu0 0.0
    %495 = vmatprep.subr.mxu0 0.0
    %496 = vmatpush2.msra.mxu0 0.0
    %497 = vmatprep.subr.mxu0 0.0
    %498 = vmatpush2.msra.mxu0 0.0
    %499 = vmatprep.mubr.f32.mxu0 0.0
    %500 = vmatmul.mubr.f32.gmra.mxu0 %v220
    %v501 = vpop.f32.mrf.mxu0
    %v502 = vadd.f32 %v388, %v501
    %v503 = vpop.f32.mrf.mxu0
    %v504 = vadd.f32 %v392, %v503
    %505 = vdwg.mxu0
    %506 = vmatprep.subr.mxu0 %v374
    %507 = vmatpush1.msra.mxu0 %v373
    %508 = vmatprep.subr.mxu0 %v364
    %509 = vmatpush1.msra.mxu0 %v363
    %510 = vmatprep.subr.mxu0 %v354
    %511 = vmatpush1.msra.mxu0 %v353
    %512 = vmatprep.subr.mxu0 %v344
    %513 = vmatpush1.msra.mxu0 %v343
    %514 = vmatprep.subr.mxu0 %v334
    %515 = vmatpush1.msra.mxu0 %v333
    %516 = vmatprep.subr.mxu0 %v324
    %517 = vmatpush1.msra.mxu0 %v323
    %518 = vmatprep.subr.mxu0 %v314
    %519 = vmatpush1.msra.mxu0 %v313
    %520 = vmatprep.subr.mxu0 %v304
    %521 = vmatpush1.msra.mxu0 %v303
    %522 = vmatprep.subr.mxu0 %v294
    %523 = vmatpush1.msra.mxu0 %v293
    %524 = vmatprep.subr.mxu0 %v284
    %525 = vmatpush1.msra.mxu0 %v283
    %526 = vmatprep.subr.mxu0 %v274
    %527 = vmatpush1.msra.mxu0 %v273
    %528 = vmatprep.subr.mxu0 %v264
    %529 = vmatpush1.msra.mxu0 %v263
    %530 = vmatprep.subr.mxu0 %v254
    %531 = vmatpush1.msra.mxu0 %v253
    %532 = vmatprep.subr.mxu0 %v244
    %533 = vmatpush1.msra.mxu0 %v243
    %534 = vmatprep.subr.mxu0 %v234
    %535 = vmatpush1.msra.mxu0 %v233
    %536 = vmatprep.subr.mxu0 %v224
    %537 = vmatpush1.msra.mxu0 %v223
    %538 = vmatprep.subr.mxu0 0.0
    %539 = vmatpush2.msra.mxu0 0.0
    %540 = vmatprep.subr.mxu0 0.0
    %541 = vmatpush2.msra.mxu0 0.0
    %542 = vmatprep.subr.mxu0 0.0
    %543 = vmatpush2.msra.mxu0 0.0
    %544 = vmatprep.subr.mxu0 0.0
    %545 = vmatpush2.msra.mxu0 0.0
    %546 = vmatprep.subr.mxu0 0.0
    %547 = vmatpush2.msra.mxu0 0.0
    %548 = vmatprep.subr.mxu0 0.0
    %549 = vmatpush2.msra.mxu0 0.0
    %550 = vmatprep.subr.mxu0 0.0
    %551 = vmatpush2.msra.mxu0 0.0
    %552 = vmatprep.subr.mxu0 0.0
    %553 = vmatpush2.msra.mxu0 0.0
    %554 = vmatprep.subr.mxu0 0.0
    %555 = vmatpush2.msra.mxu0 0.0
    %556 = vmatprep.subr.mxu0 0.0
    %557 = vmatpush2.msra.mxu0 0.0
    %558 = vmatprep.subr.mxu0 0.0
    %559 = vmatpush2.msra.mxu0 0.0
    %560 = vmatprep.subr.mxu0 0.0
    %561 = vmatpush2.msra.mxu0 0.0
    %562 = vmatprep.subr.mxu0 0.0
    %563 = vmatpush2.msra.mxu0 0.0
    %564 = vmatprep.subr.mxu0 0.0
    %565 = vmatpush2.msra.mxu0 0.0
    %566 = vmatprep.subr.mxu0 0.0
    %567 = vmatpush2.msra.mxu0 0.0
    %568 = vmatprep.subr.mxu0 0.0
    %569 = vmatpush2.msra.mxu0 0.0
    %570 = vmatprep.mubr.f32.mxu0 0.0
    %571 = vmatmul.mubr.f32.gmra.mxu0 %v220
    %v572 = vpop.f32.mrf.mxu0
    %v573 = vadd.f32 %v396, %v572
    %v574 = vpop.f32.mrf.mxu0
    %v575 = vadd.f32 %v400, %v574
    %576 = vdwg.mxu0
    %577 = vmatprep.subr.mxu0 %v376
    %578 = vmatpush1.msra.mxu0 %v375
    %579 = vmatprep.subr.mxu0 %v366
    %580 = vmatpush1.msra.mxu0 %v365
    %581 = vmatprep.subr.mxu0 %v356
    %582 = vmatpush1.msra.mxu0 %v355
    %583 = vmatprep.subr.mxu0 %v346
    %584 = vmatpush1.msra.mxu0 %v345
    %585 = vmatprep.subr.mxu0 %v336
    %586 = vmatpush1.msra.mxu0 %v335
    %587 = vmatprep.subr.mxu0 %v326
    %588 = vmatpush1.msra.mxu0 %v325
    %589 = vmatprep.subr.mxu0 %v316
    %590 = vmatpush1.msra.mxu0 %v315
    %591 = vmatprep.subr.mxu0 %v306
    %592 = vmatpush1.msra.mxu0 %v305
    %593 = vmatprep.subr.mxu0 %v296
    %594 = vmatpush1.msra.mxu0 %v295
    %595 = vmatprep.subr.mxu0 %v286
    %596 = vmatpush1.msra.mxu0 %v285
    %597 = vmatprep.subr.mxu0 %v276
    %598 = vmatpush1.msra.mxu0 %v275
    %599 = vmatprep.subr.mxu0 %v266
    %600 = vmatpush1.msra.mxu0 %v265
    %601 = vmatprep.subr.mxu0 %v256
    %602 = vmatpush1.msra.mxu0 %v255
    %603 = vmatprep.subr.mxu0 %v246
    %604 = vmatpush1.msra.mxu0 %v245
    %605 = vmatprep.subr.mxu0 %v236
    %606 = vmatpush1.msra.mxu0 %v235
    %607 = vmatprep.subr.mxu0 %v226
    %608 = vmatpush1.msra.mxu0 %v225
    %609 = vmatprep.subr.mxu0 0.0
    %610 = vmatpush2.msra.mxu0 0.0
    %611 = vmatprep.subr.mxu0 0.0
    %612 = vmatpush2.msra.mxu0 0.0
    %613 = vmatprep.subr.mxu0 0.0
    %614 = vmatpush2.msra.mxu0 0.0
    %615 = vmatprep.subr.mxu0 0.0
    %616 = vmatpush2.msra.mxu0 0.0
    %617 = vmatprep.subr.mxu0 0.0
    %618 = vmatpush2.msra.mxu0 0.0
    %619 = vmatprep.subr.mxu0 0.0
    %620 = vmatpush2.msra.mxu0 0.0
    %621 = vmatprep.subr.mxu0 0.0
    %622 = vmatpush2.msra.mxu0 0.0
    %623 = vmatprep.subr.mxu0 0.0
    %624 = vmatpush2.msra.mxu0 0.0
    %625 = vmatprep.subr.mxu0 0.0
    %626 = vmatpush2.msra.mxu0 0.0
    %627 = vmatprep.subr.mxu0 0.0
    %628 = vmatpush2.msra.mxu0 0.0
    %629 = vmatprep.subr.mxu0 0.0
    %630 = vmatpush2.msra.mxu0 0.0
    %631 = vmatprep.subr.mxu0 0.0
    %632 = vmatpush2.msra.mxu0 0.0
    %633 = vmatprep.subr.mxu0 0.0
    %634 = vmatpush2.msra.mxu0 0.0
    %635 = vmatprep.subr.mxu0 0.0
    %636 = vmatpush2.msra.mxu0 0.0
    %637 = vmatprep.subr.mxu0 0.0
    %638 = vmatpush2.msra.mxu0 0.0
    %639 = vmatprep.subr.mxu0 0.0
    %640 = vmatpush2.msra.mxu0 0.0
    %641 = vmatprep.mubr.f32.mxu0 0.0
    %642 = vmatmul.mubr.f32.gmra.mxu0 %v220
    %v643 = vpop.f32.mrf.mxu0
    %v644 = vadd.f32 %v404, %v643
    %v645 = vpop.f32.mrf.mxu0
    %v646 = vadd.f32 %v408, %v645
    %647 = vdwg.mxu0
    %648 = vmatprep.subr.mxu0 %v378
    %649 = vmatpush1.msra.mxu0 %v377
    %650 = vmatprep.subr.mxu0 %v368
    %651 = vmatpush1.msra.mxu0 %v367
    %652 = vmatprep.subr.mxu0 %v358
    %653 = vmatpush1.msra.mxu0 %v357
    %654 = vmatprep.subr.mxu0 %v348
    %655 = vmatpush1.msra.mxu0 %v347
    %656 = vmatprep.subr.mxu0 %v338
    %657 = vmatpush1.msra.mxu0 %v337
    %658 = vmatprep.subr.mxu0 %v328
    %659 = vmatpush1.msra.mxu0 %v327
    %660 = vmatprep.subr.mxu0 %v318
    %661 = vmatpush1.msra.mxu0 %v317
    %662 = vmatprep.subr.mxu0 %v308
    %663 = vmatpush1.msra.mxu0 %v307
    %664 = vmatprep.subr.mxu0 %v298
    %665 = vmatpush1.msra.mxu0 %v297
    %666 = vmatprep.subr.mxu0 %v288
    %667 = vmatpush1.msra.mxu0 %v287
    %668 = vmatprep.subr.mxu0 %v278
    %669 = vmatpush1.msra.mxu0 %v277
    %670 = vmatprep.subr.mxu0 %v268
    %671 = vmatpush1.msra.mxu0 %v267
    %672 = vmatprep.subr.mxu0 %v258
    %673 = vmatpush1.msra.mxu0 %v257
    %674 = vmatprep.subr.mxu0 %v248
    %675 = vmatpush1.msra.mxu0 %v247
    %676 = vmatprep.subr.mxu0 %v238
    %677 = vmatpush1.msra.mxu0 %v237
    %678 = vmatprep.subr.mxu0 %v228
    %679 = vmatpush1.msra.mxu0 %v227
    %680 = vmatprep.subr.mxu0 0.0
    %681 = vmatpush2.msra.mxu0 0.0
    %682 = vmatprep.subr.mxu0 0.0
    %683 = vmatpush2.msra.mxu0 0.0
    %684 = vmatprep.subr.mxu0 0.0
    %685 = vmatpush2.msra.mxu0 0.0
    %686 = vmatprep.subr.mxu0 0.0
    %687 = vmatpush2.msra.mxu0 0.0
    %688 = vmatprep.subr.mxu0 0.0
    %689 = vmatpush2.msra.mxu0 0.0
    %690 = vmatprep.subr.mxu0 0.0
    %691 = vmatpush2.msra.mxu0 0.0
    %692 = vmatprep.subr.mxu0 0.0
    %693 = vmatpush2.msra.mxu0 0.0
    %694 = vmatprep.subr.mxu0 0.0
    %695 = vmatpush2.msra.mxu0 0.0
    %696 = vmatprep.subr.mxu0 0.0
    %697 = vmatpush2.msra.mxu0 0.0
    %698 = vmatprep.subr.mxu0 0.0
    %699 = vmatpush2.msra.mxu0 0.0
    %700 = vmatprep.subr.mxu0 0.0
    %701 = vmatpush2.msra.mxu0 0.0
    %702 = vmatprep.subr.mxu0 0.0
    %703 = vmatpush2.msra.mxu0 0.0
    %704 = vmatprep.subr.mxu0 0.0
    %705 = vmatpush2.msra.mxu0 0.0
    %706 = vmatprep.subr.mxu0 0.0
    %707 = vmatpush2.msra.mxu0 0.0
    %708 = vmatprep.subr.mxu0 0.0
    %709 = vmatpush2.msra.mxu0 0.0
    %710 = vmatprep.subr.mxu0 0.0
    %711 = vmatpush2.msra.mxu0 0.0
    %712 = vmatprep.mubr.f32.mxu0 0.0
    %713 = vmatmul.mubr.f32.gmra.mxu0 %v220
    %v714 = vpop.f32.mrf.mxu0
    %v715 = vadd.f32 %v412, %v714
    %v716 = vpop.f32.mrf.mxu0
    %v717 = vadd.f32 %v416, %v716
    %718 = vdwg.mxu0
    %719 = vmatprep.subr.mxu0 %v380
    %720 = vmatpush1.msra.mxu0 %v379
    %721 = vmatprep.subr.mxu0 %v370
    %722 = vmatpush1.msra.mxu0 %v369
    %723 = vmatprep.subr.mxu0 %v360
    %724 = vmatpush1.msra.mxu0 %v359
    %725 = vmatprep.subr.mxu0 %v350
    %726 = vmatpush1.msra.mxu0 %v349
    %727 = vmatprep.subr.mxu0 %v340
    %728 = vmatpush1.msra.mxu0 %v339
    %729 = vmatprep.subr.mxu0 %v330
    %730 = vmatpush1.msra.mxu0 %v329
    %731 = vmatprep.subr.mxu0 %v320
    %732 = vmatpush1.msra.mxu0 %v319
    %733 = vmatprep.subr.mxu0 %v310
    %734 = vmatpush1.msra.mxu0 %v309
    %735 = vmatprep.subr.mxu0 %v300
    %736 = vmatpush1.msra.mxu0 %v299
    %737 = vmatprep.subr.mxu0 %v290
    %738 = vmatpush1.msra.mxu0 %v289
    %739 = vmatprep.subr.mxu0 %v280
    %740 = vmatpush1.msra.mxu0 %v279
    %741 = vmatprep.subr.mxu0 %v270
    %742 = vmatpush1.msra.mxu0 %v269
    %743 = vmatprep.subr.mxu0 %v260
    %744 = vmatpush1.msra.mxu0 %v259
    %745 = vmatprep.subr.mxu0 %v250
    %746 = vmatpush1.msra.mxu0 %v249
    %747 = vmatprep.subr.mxu0 %v240
    %748 = vmatpush1.msra.mxu0 %v239
    %749 = vmatprep.subr.mxu0 %v230
    %750 = vmatpush1.msra.mxu0 %v229
    %751 = vmatprep.subr.mxu0 0.0
    %752 = vmatpush2.msra.mxu0 0.0
    %753 = vmatprep.subr.mxu0 0.0
    %754 = vmatpush2.msra.mxu0 0.0
    %755 = vmatprep.subr.mxu0 0.0
    %756 = vmatpush2.msra.mxu0 0.0
    %757 = vmatprep.subr.mxu0 0.0
    %758 = vmatpush2.msra.mxu0 0.0
    %759 = vmatprep.subr.mxu0 0.0
    %760 = vmatpush2.msra.mxu0 0.0
    %761 = vmatprep.subr.mxu0 0.0
    %762 = vmatpush2.msra.mxu0 0.0
    %763 = vmatprep.subr.mxu0 0.0
    %764 = vmatpush2.msra.mxu0 0.0
    %765 = vmatprep.subr.mxu0 0.0
    %766 = vmatpush2.msra.mxu0 0.0
    %767 = vmatprep.subr.mxu0 0.0
    %768 = vmatpush2.msra.mxu0 0.0
    %769 = vmatprep.subr.mxu0 0.0
    %770 = vmatpush2.msra.mxu0 0.0
    %771 = vmatprep.subr.mxu0 0.0
    %772 = vmatpush2.msra.mxu0 0.0
    %773 = vmatprep.subr.mxu0 0.0
    %774 = vmatpush2.msra.mxu0 0.0
    %775 = vmatprep.subr.mxu0 0.0
    %776 = vmatpush2.msra.mxu0 0.0
    %777 = vmatprep.subr.mxu0 0.0
    %778 = vmatpush2.msra.mxu0 0.0
    %779 = vmatprep.subr.mxu0 0.0
    %780 = vmatpush2.msra.mxu0 0.0
    %781 = vmatprep.subr.mxu0 0.0
    %782 = vmatpush2.msra.mxu0 0.0
    %783 = vmatprep.mubr.f32.mxu0 0.0
    %784 = vmatmul.mubr.f32.gmra.mxu0 %v220
    %v785 = vpop.f32.mrf.mxu0
    %v786 = vadd.f32 %v420, %v785
    %v787 = vpop.f32.mrf.mxu0
    %v788 = vadd.f32 %v424, %v787
    %789 = vdwg.mxu0
    %v790 = vmax.f32 %v502, %v644
    %v791 = vmax.f32 %v504, %v646
    %v792 = vmax.f32 %v573, %v715
    %v793 = vmax.f32 %v575, %v717
    %v794 = vmax.f32 %v790, %v786
    %v795 = vmax.f32 %v791, %v788
    %v796 = vmax.f32 %v794, %v795
    %v797 = vmax.f32 %v792, %v793
    %v798 = vmax.f32 %v796, %v797
    %799 = vmax.xlane.f32.xlu0 %v798
    %v800 = vpop.xlane.xlu0 %799
    %v801 = vsub.f32 %v502, %v800
    %v802 = vsub.f32 %v504, %v800
    %v803 = vsub.f32 %v573, %v800
    %v804 = vsub.f32 %v575, %v800
    %v805 = vsub.f32 %v644, %v800
    %v806 = vsub.f32 %v646, %v800
    %v807 = vsub.f32 %v715, %v800
    %v808 = vsub.f32 %v717, %v800
    %v809 = vsub.f32 %v786, %v800
    %v810 = vsub.f32 %v788, %v800
    %v811 = vmul.f32 %v801, 1.442695
    %v812 = vpow.pop %v811
    %v813 = vmul.f32 %v802, 1.442695
    %v814 = vpow.pop %v813
    %v815 = vmul.f32 %v803, 1.442695
    %v816 = vpow.pop %v815
    %v817 = vmul.f32 %v804, 1.442695
    %v818 = vpow.pop %v817
    %v819 = vmul.f32 %v805, 1.442695
    %v820 = vpow.pop %v819
    %v821 = vmul.f32 %v806, 1.442695
    %v822 = vpow.pop %v821
    %v823 = vmul.f32 %v807, 1.442695
    %v824 = vpow.pop %v823
    %v825 = vmul.f32 %v808, 1.442695
    %v826 = vpow.pop %v825
    %v827 = vmul.f32 %v809, 1.442695
    %v828 = vpow.pop %v827
    %v829 = vmul.f32 %v810, 1.442695
    %v830 = vpow.pop %v829
    %v831 = vadd.f32 %v812, %v814
    %v832 = vadd.f32 %v831, %v816
    %v833 = vadd.f32 %v832, %v818
    %v834 = vadd.f32 %v833, %v820
    %v835 = vadd.f32 %v834, %v822
    %v836 = vadd.f32 %v835, %v824
    %v837 = vadd.f32 %v836, %v826
    %v838 = vadd.f32 %v837, %v828
    %v839 = vadd.f32 %v838, %v830
    %840 = vadd.xlane.f32.xlu0 %v839
    %v841 = vpop.xlane.xlu0 %840
    %v842 = vrcp.pop %v841
    %v843 = vmul.f32 %v812, %v842
    %v844 = vmul.f32 %v814, %v842
    %v845 = vmul.f32 %v816, %v842
    %v846 = vmul.f32 %v818, %v842
    %v847 = vmul.f32 %v820, %v842
    %v848 = vmul.f32 %v822, %v842
    %v849 = vmul.f32 %v824, %v842
    %v850 = vmul.f32 %v826, %v842
    %v851 = vmul.f32 %v828, %v842
    %v852 = vmul.f32 %v830, %v842
    %853 = vst [vmem:[#allocation11] sm:$0xff] %v843
    %854 = vst [vmem:[#allocation11 + $0x8] sm:$0xff] %v844
    %855 = vst [vmem:[#allocation11 + $0x10] sm:$0xff] %v845
    %856 = vst [vmem:[#allocation11 + $0x18] sm:$0xff] %v846
    %857 = vst [vmem:[#allocation11 + $0x20] sm:$0xff] %v847
    %858 = vst [vmem:[#allocation11 + $0x28] sm:$0xff] %v848
    %859 = vst [vmem:[#allocation11 + $0x30] sm:$0xff] %v849
    %860 = vst [vmem:[#allocation11 + $0x38] sm:$0xff] %v850
    %861 = vst [vmem:[#allocation11 + $0x40] sm:$0xff] %v851
    %862 = vst [vmem:[#allocation11 + $0x48] sm:$0xff] %v852
    // Predicated region
    $region50: #{block_skipgram_forward.1} parent=1 // pred_check
      _
    $region51: #{block_skipgram_forward.1} parent=1 // pred_check_branch
      %864 = sbr.rel (0) target = $region53
    $region52: #{block_skipgram_forward.1} parent=1 // pred_region
      %s866 = ssub.s32 1280, 1280
      %867 = vsyncadd [#allocation8], %s866
      %s869 = sshll.u32 [#allocation11], 4
      %s870 = int_to_ptr.vmem [resolvable:$true] %s869
      %872 = dma.vmem_to_hbm [thread:$0]  %s870, 1280, %s4, [#allocation8]
    $region53: #{block_skipgram_forward.1} parent=1 // pred_fallthru
      _
    // Predicated region
    $region54: #{block_skipgram_forward.1} parent=1 // pred_check
      _
    $region55: #{block_skipgram_forward.1} parent=1 // pred_check_branch
      %874 = sbr.rel (0) target = $region57
    $region56: #{block_skipgram_forward.1} parent=1 // pred_region
      %875 = dma.done [#allocation8], 1280
    $region57: #{block_skipgram_forward.1} parent=1 // pred_fallthru
      _
    %876 = vsyncpa [#allocation7], 1
    %877 = vsyncpa [#allocation10], 1
    %878 = vsyncpa [#allocation8], 1
  %879 = vsyncmov [#allocation3]
  %s880 = vpop.sfrf %879
  %p881 = scmp.eq.s32.totalorder %s880, 0
  %p882 = pneg %p881
  %884 = shalt.err (%p882)

</llo_original>
